<compile_context>
chip_gen: v7x
topology: tpu7x:2x2x1
jax: 0.10.0
libtpu: 0.0.40
codegen_flags: <defaults>
</compile_context>

<pallas_src>
import functools

import numpy as np

import jax
import jax.numpy as jnp
from jax.experimental import pallas as pl
from jax.experimental.pallas import tpu as pltpu


# ----------------------------- Pallas kernel -------------------------------

def _fused_resnet_kernel(x_ref, w1_ref, b1_ref, w2_ref, b2_ref,
                         fc_ref, fcb_ref, o_ref, pad_ref, *, N, H, W, C):
    """One grid step = one full sub-model (conv->relu->conv+res->relu->pool->FC).

    x_ref : (N*H, W*C)     lane-dense activations for this model
    w*_ref: (3*W*C, W*C)   banded conv weights (kh along the contraction)
    b*_ref: (1, W*C)       bias tiled across W
    fc_ref: (W*C, K)       FC weight with the average-pool folded in
    fcb_ref: (1, K)
    o_ref : (N, K)         per-model head output
    pad_ref: VMEM scratch (N, H+2, W*C), zero row border for SAME padding
    """
    WC = W * C
    x_flat = x_ref[...]                                        # (N*H, WC)

    # Zero once; the border rows (h = 0 and H+1) stay zero for both convs.
    pad_ref[...] = jnp.zeros_like(pad_ref)

    def conv3x3(w_ref_c, b_row, residual, src_flat):
        # Stage source rows into the padded scratch (interior rows only).
        pad_ref[:, 1:H + 1, :] = src_flat.reshape(N, H, WC)
        # Sliding 3-row window -> a single GEMM with contraction 3*WC.
        patches = jnp.concatenate(
            [pad_ref[:, kh:kh + H, :] for kh in range(3)], axis=-1
        ).reshape(N * H, 3 * WC)                               # (N*H, 3*WC)
        out = jnp.dot(patches, w_ref_c[...],
                      preferred_element_type=jnp.float32)      # (N*H, WC)
        return jnp.maximum(out + b_row + residual, 0.0)

    h1 = conv3x3(w1_ref, b1_ref[...], 0.0, x_flat)
    h2 = conv3x3(w2_ref, b2_ref[...], x_flat, h1)

    # Global average pool (scale + channel-gather folded into fc_ref) + head.
    colsum = jnp.sum(h2.reshape(N, H, WC), axis=1)             # (N, WC)
    o_ref[...] = (jnp.dot(colsum, fc_ref[...],
                          preferred_element_type=jnp.float32) + fcb_ref[...])


# ------------------------------ wrapper -------------------------------------

def doublemodel_forward(x_nchw, y_nchw, p1, p2):
    N, C, H, W = x_nchw.shape
    WC = W * C
    K = p1["fcw"].shape[1]

    def to_flat(a):  # PyTorch NCHW -> NHWC -> lane-dense (N*H, W*C)
        return jnp.transpose(a, (0, 2, 3, 1)).astype(jnp.float32).reshape(N * H, WC)

    acts = jnp.stack([to_flat(x_nchw), to_flat(y_nchw)])       # (2, N*H, WC)
    stack = lambda k: jnp.stack([p1[k], p2[k]])

    kern = functools.partial(_fused_resnet_kernel, N=N, H=H, W=W, C=C)

    def spec(*dims):  # model axis squeezed; full (lane-dense) blocks otherwise
        return pl.BlockSpec((None,) + dims, lambda m: (m,) + (0,) * len(dims))

    out2 = pl.pallas_call(
        kern,
        out_shape=jax.ShapeDtypeStruct((2, N, K), jnp.float32),
        grid=(2,),
        in_specs=[
            spec(N * H, WC),        # activations
            spec(3 * WC, WC),       # conv1 banded weight
            spec(1, WC),            # conv1 bias row
            spec(3 * WC, WC),       # conv2 banded weight
            spec(1, WC),            # conv2 bias row
            spec(WC, K),            # fc weight (pool folded in)
            spec(1, K),             # fc bias
        ],
        out_specs=spec(N, K),
        scratch_shapes=[pltpu.VMEM((N, H + 2, WC), jnp.float32)],
        compiler_params=pltpu.CompilerParams(
            dimension_semantics=("parallel",),      # 2 models -> 2 TCs on v7x
            vmem_limit_bytes=32 * 1024 * 1024,
        ),
    )(acts, stack("w_band1"), stack("b_row1"), stack("w_band2"),
      stack("b_row2"), stack("fc_pool"), stack("fcb_row"))

    # doublemodel: model1(x) + model2(y).  Tiny (N,K) add at the boundary so
    # the two sub-models need no cross-core reduction.
    return out2[0] + out2[1]


# ------------------------- deterministic params ------------------------------

def _banded_conv_weight(w_hwio, W):
    """Fold (3,3,C,C) HWIO conv weights into a (3*W*C, W*C) banded GEMM matrix.

    M[kh*W*C + wi*C + ci, wo*C + co] = w[kh, wi-wo+1, ci, co]  (SAME padding,
    out-of-range wi contributes zero -> implements the width padding).
    """
    C = w_hwio.shape[2]
    wn = np.asarray(w_hwio, np.float32)
    M = np.zeros((3, W * C, W * C), np.float32)
    for kh in range(3):
        for wo in range(W):
            for kw in range(3):
                wi = wo + kw - 1
                if 0 <= wi < W:
                    M[kh, wi * C:(wi + 1) * C, wo * C:(wo + 1) * C] = wn[kh, kw]
    return jnp.asarray(M.reshape(3 * W * C, W * C))


def make_params(key, C, K, H, W):
    k1, k2, k3, k4, k5, k6 = jax.random.split(key, 6)
    w1 = 0.1 * jax.random.normal(k1, (3, 3, C, C), jnp.float32)
    b1 = 0.1 * jax.random.normal(k2, (C,), jnp.float32)
    w2 = 0.1 * jax.random.normal(k3, (3, 3, C, C), jnp.float32)
    b2 = 0.1 * jax.random.normal(k4, (C,), jnp.float32)
    fcw = 0.1 * jax.random.normal(k5, (C, K), jnp.float32)
    fcb = 0.1 * jax.random.normal(k6, (K,), jnp.float32)
    return {
        # reference-layout params
        "w1": w1, "b1": b1, "w2": w2, "b2": b2, "fcw": fcw, "fcb": fcb,
        # kernel-layout params (one-time host-side prep)
        "w_band1": _banded_conv_weight(w1, W),
        "w_band2": _banded_conv_weight(w2, W),
        "b_row1": jnp.tile(b1, W).reshape(1, W * C),
        "b_row2": jnp.tile(b2, W).reshape(1, W * C),
        "fc_pool": jnp.tile(fcw, (W, 1)) / float(H * W),   # (W*C, K)
        "fcb_row": fcb.reshape(1, K),
    }


# ------------------------------ reference ------------------------------------

def _conv_ref(x, w, b):
    return jax.lax.conv_general_dilated(
        x, w, window_strides=(1, 1), padding="SAME",
        dimension_numbers=("NHWC", "HWIO", "NHWC"),
        precision=jax.lax.Precision.HIGHEST) + b


def _model_ref(x_nhwc, p):
    h = jax.nn.relu(_conv_ref(x_nhwc, p["w1"], p["b1"]))
    h = jax.nn.relu(_conv_ref(h, p["w2"], p["b2"]) + x_nhwc)
    pool = h.mean(axis=(1, 2))
    return pool @ p["fcw"] + p["fcb"]


def doublemodel_ref(x_nchw, y_nchw, p1, p2):
    x = jnp.transpose(x_nchw, (0, 2, 3, 1)).astype(jnp.float32)
    y = jnp.transpose(y_nchw, (0, 2, 3, 1)).astype(jnp.float32)
    return _model_ref(x, p1) + _model_ref(y, p2)


# --------------------------------- main --------------------------------------

if __name__ == "__main__":
    # W*C = 16*8 = 128 -> fully lane-dense activations.
    N, C, H, W, K = 2, 8, 16, 16, 8

    key = jax.random.PRNGKey(0)
    kx, ky, kp1, kp2 = jax.random.split(key, 4)
    x = jax.random.normal(kx, (N, C, H, W), jnp.float32)   # PyTorch-style NCHW
    y = jax.random.normal(ky, (N, C, H, W), jnp.float32)

    p1 = make_params(kp1, C, K, H, W)
    p2 = make_params(kp2, C, K, H, W)

    out = jax.block_until_ready(doublemodel_forward(x, y, p1, p2))
    ref = jax.block_until_ready(doublemodel_ref(x, y, p1, p2))

    assert out.shape == (N, K), out.shape
    assert jnp.allclose(out, ref, rtol=1e-2, atol=1e-2), (out, ref)

    # TODO(synk): resnet1/resnet2 are injected in the PyTorch spec; a minimal
    # synthetic ResNet block stands in for them here.
    print("KERNEL_OK")
</pallas_src>

<mosaic_0001>
module attributes {stable_mosaic.version = 11 : i64} {
  func.func @_fused_resnet_kernel(%arg0: i32, %arg1: memref<1x32x128xf32, #tpu.memory_space<vmem>>, %arg2: memref<1x384x128xf32, #tpu.memory_space<vmem>>, %arg3: memref<1x1x128xf32, #tpu.memory_space<vmem>>, %arg4: memref<1x384x128xf32, #tpu.memory_space<vmem>>, %arg5: memref<1x1x128xf32, #tpu.memory_space<vmem>>, %arg6: memref<1x128x8xf32, #tpu.memory_space<vmem>>, %arg7: memref<1x1x8xf32, #tpu.memory_space<vmem>>, %arg8: memref<1x2x8xf32, #tpu.memory_space<vmem>>, %arg9: memref<2x18x128xf32, #tpu.memory_space<vmem>>) attributes {dimension_semantics = [#tpu.dimension_semantics<parallel>], iteration_bounds = array<i64: 2>, scalar_prefetch = 0 : i64, scratch_operands = 1 : i64, tpu.core_type = #tpu.core_type<tc>, window_params = [{transform_indices = @transform_0, window_bounds = array<i64: 1, 32, 128>}, {transform_indices = @transform_1, window_bounds = array<i64: 1, 384, 128>}, {transform_indices = @transform_2, window_bounds = array<i64: 1, 1, 128>}, {transform_indices = @transform_3, window_bounds = array<i64: 1, 384, 128>}, {transform_indices = @transform_4, window_bounds = array<i64: 1, 1, 128>}, {transform_indices = @transform_5, window_bounds = array<i64: 1, 128, 8>}, {transform_indices = @transform_6, window_bounds = array<i64: 1, 1, 8>}, {transform_indices = @transform_7, window_bounds = array<i64: 1, 2, 8>}]} {
    %c0 = arith.constant 0 : index
    %c0_0 = arith.constant 0 : index
    %c0_1 = arith.constant 0 : index
    %0 = vector.load %arg1[%c0, %c0_0, %c0_1] : memref<1x32x128xf32, #tpu.memory_space<vmem>>, vector<1x32x128xf32>
    %1 = vector.shape_cast %0 : vector<1x32x128xf32> to vector<32x128xf32>
    %cst = arith.constant 0.000000e+00 : f32
    %2 = vector.broadcast %cst : f32 to vector<2x18x128xf32>
    %c0_2 = arith.constant 0 : index
    %c0_3 = arith.constant 0 : index
    %c0_4 = arith.constant 0 : index
    %3 = vector.load %arg9[%c0_2, %c0_3, %c0_4] : memref<2x18x128xf32, #tpu.memory_space<vmem>>, vector<2x18x128xf32>
    tpu.vector_store %arg9[%c0_2, %c0_3, %c0_4], %2 {strides = array<i32>} : memref<2x18x128xf32, #tpu.memory_space<vmem>>, vector<2x18x128xf32>,
    %c0_5 = arith.constant 0 : index
    %c0_6 = arith.constant 0 : index
    %c0_7 = arith.constant 0 : index
    %4 = vector.load %arg3[%c0_5, %c0_6, %c0_7] : memref<1x1x128xf32, #tpu.memory_space<vmem>>, vector<1x1x128xf32>
    %5 = vector.shape_cast %4 : vector<1x1x128xf32> to vector<1x128xf32>
    %6 = vector.shape_cast %1 : vector<32x128xf32> to vector<2x16x128xf32>
    %c0_8 = arith.constant 0 : index
    %c1 = arith.constant 1 : index
    %c0_9 = arith.constant 0 : index
    %7 = vector.load %arg9[%c0_8, %c1, %c0_9] : memref<2x18x128xf32, #tpu.memory_space<vmem>>, vector<2x16x128xf32>
    tpu.vector_store %arg9[%c0_8, %c1, %c0_9], %6 {strides = array<i32>} : memref<2x18x128xf32, #tpu.memory_space<vmem>>, vector<2x16x128xf32>,
    %c0_10 = arith.constant 0 : index
    %c0_11 = arith.constant 0 : index
    %c0_12 = arith.constant 0 : index
    %8 = vector.load %arg9[%c0_10, %c0_11, %c0_12] : memref<2x18x128xf32, #tpu.memory_space<vmem>>, vector<2x16x128xf32>
    %c0_13 = arith.constant 0 : index
    %c1_14 = arith.constant 1 : index
    %c0_15 = arith.constant 0 : index
    %9 = vector.load %arg9[%c0_13, %c1_14, %c0_15] : memref<2x18x128xf32, #tpu.memory_space<vmem>>, vector<2x16x128xf32>
    %c0_16 = arith.constant 0 : index
    %c2 = arith.constant 2 : index
    %c0_17 = arith.constant 0 : index
    %10 = vector.load %arg9[%c0_16, %c2, %c0_17] : memref<2x18x128xf32, #tpu.memory_space<vmem>>, vector<2x16x128xf32>
    %11 = tpu.concatenate %8, %9, %10 in 2 : vector<2x16x128xf32>, vector<2x16x128xf32>, vector<2x16x128xf32> -> vector<2x16x384xf32>
    %12 = vector.shape_cast %11 : vector<2x16x384xf32> to vector<32x384xf32>
    %c0_18 = arith.constant 0 : index
    %c0_19 = arith.constant 0 : index
    %c0_20 = arith.constant 0 : index
    %13 = vector.load %arg2[%c0_18, %c0_19, %c0_20] : memref<1x384x128xf32, #tpu.memory_space<vmem>>, vector<1x384x128xf32>
    %14 = vector.shape_cast %13 : vector<1x384x128xf32> to vector<384x128xf32>
    %cst_21 = arith.constant dense<0.000000e+00> : vector<32x128xf32>
    %15 = tpu.matmul %12, %14, %cst_21 {dimension_numbers = #tpu.dot_dimension_numbers<[1], [0], [0], [1], [0, 0, 1, 1], [], []>} : vector<32x384xf32>, vector<384x128xf32>, vector<32x128xf32> -> vector<32x128xf32>
    %16 = vector.broadcast %5 : vector<1x128xf32> to vector<32x128xf32>
    %17 = arith.addf %15, %16 : vector<32x128xf32>
    %cst_22 = arith.constant 0.000000e+00 : f32
    %18 = vector.broadcast %cst_22 : f32 to vector<32x128xf32>
    %19 = arith.addf %17, %18 : vector<32x128xf32>
    %cst_23 = arith.constant 0.000000e+00 : f32
    %20 = vector.broadcast %cst_23 : f32 to vector<32x128xf32>
    %21 = arith.maximumf %19, %20 : vector<32x128xf32>
    %c0_24 = arith.constant 0 : index
    %c0_25 = arith.constant 0 : index
    %c0_26 = arith.constant 0 : index
    %22 = vector.load %arg5[%c0_24, %c0_25, %c0_26] : memref<1x1x128xf32, #tpu.memory_space<vmem>>, vector<1x1x128xf32>
    %23 = vector.shape_cast %22 : vector<1x1x128xf32> to vector<1x128xf32>
    %24 = vector.shape_cast %21 : vector<32x128xf32> to vector<2x16x128xf32>
    %c0_27 = arith.constant 0 : index
    %c1_28 = arith.constant 1 : index
    %c0_29 = arith.constant 0 : index
    %25 = vector.load %arg9[%c0_27, %c1_28, %c0_29] : memref<2x18x128xf32, #tpu.memory_space<vmem>>, vector<2x16x128xf32>
    tpu.vector_store %arg9[%c0_27, %c1_28, %c0_29], %24 {strides = array<i32>} : memref<2x18x128xf32, #tpu.memory_space<vmem>>, vector<2x16x128xf32>,
    %c0_30 = arith.constant 0 : index
    %c0_31 = arith.constant 0 : index
    %c0_32 = arith.constant 0 : index
    %26 = vector.load %arg9[%c0_30, %c0_31, %c0_32] : memref<2x18x128xf32, #tpu.memory_space<vmem>>, vector<2x16x128xf32>
    %c0_33 = arith.constant 0 : index
    %c1_34 = arith.constant 1 : index
    %c0_35 = arith.constant 0 : index
    %27 = vector.load %arg9[%c0_33, %c1_34, %c0_35] : memref<2x18x128xf32, #tpu.memory_space<vmem>>, vector<2x16x128xf32>
    %c0_36 = arith.constant 0 : index
    %c2_37 = arith.constant 2 : index
    %c0_38 = arith.constant 0 : index
    %28 = vector.load %arg9[%c0_36, %c2_37, %c0_38] : memref<2x18x128xf32, #tpu.memory_space<vmem>>, vector<2x16x128xf32>
    %29 = tpu.concatenate %26, %27, %28 in 2 : vector<2x16x128xf32>, vector<2x16x128xf32>, vector<2x16x128xf32> -> vector<2x16x384xf32>
    %30 = vector.shape_cast %29 : vector<2x16x384xf32> to vector<32x384xf32>
    %c0_39 = arith.constant 0 : index
    %c0_40 = arith.constant 0 : index
    %c0_41 = arith.constant 0 : index
    %31 = vector.load %arg4[%c0_39, %c0_40, %c0_41] : memref<1x384x128xf32, #tpu.memory_space<vmem>>, vector<1x384x128xf32>
    %32 = vector.shape_cast %31 : vector<1x384x128xf32> to vector<384x128xf32>
    %cst_42 = arith.constant dense<0.000000e+00> : vector<32x128xf32>
    %33 = tpu.matmul %30, %32, %cst_42 {dimension_numbers = #tpu.dot_dimension_numbers<[1], [0], [0], [1], [0, 0, 1, 1], [], []>} : vector<32x384xf32>, vector<384x128xf32>, vector<32x128xf32> -> vector<32x128xf32>
    %34 = vector.broadcast %23 : vector<1x128xf32> to vector<32x128xf32>
    %35 = arith.addf %33, %34 : vector<32x128xf32>
    %36 = arith.addf %35, %1 : vector<32x128xf32>
    %cst_43 = arith.constant 0.000000e+00 : f32
    %37 = vector.broadcast %cst_43 : f32 to vector<32x128xf32>
    %38 = arith.maximumf %36, %37 : vector<32x128xf32>
    %39 = vector.shape_cast %38 : vector<32x128xf32> to vector<2x16x128xf32>
    %cst_44 = arith.constant dense<0.000000e+00> : vector<2x128xf32>
    %40 = vector.multi_reduction <add>, %39, %cst_44 [1] : vector<2x16x128xf32> to vector<2x128xf32>
    %c0_45 = arith.constant 0 : index
    %c0_46 = arith.constant 0 : index
    %c0_47 = arith.constant 0 : index
    %41 = vector.load %arg6[%c0_45, %c0_46, %c0_47] : memref<1x128x8xf32, #tpu.memory_space<vmem>>, vector<1x128x8xf32>
    %42 = vector.shape_cast %41 : vector<1x128x8xf32> to vector<128x8xf32>
    %cst_48 = arith.constant dense<0.000000e+00> : vector<2x8xf32>
    %43 = tpu.matmul %40, %42, %cst_48 {dimension_numbers = #tpu.dot_dimension_numbers<[1], [0], [0], [1], [0, 0, 1, 1], [], []>} : vector<2x128xf32>, vector<128x8xf32>, vector<2x8xf32> -> vector<2x8xf32>
    %c0_49 = arith.constant 0 : index
    %c0_50 = arith.constant 0 : index
    %c0_51 = arith.constant 0 : index
    %44 = vector.load %arg7[%c0_49, %c0_50, %c0_51] : memref<1x1x8xf32, #tpu.memory_space<vmem>>, vector<1x1x8xf32>
    %45 = vector.shape_cast %44 : vector<1x1x8xf32> to vector<1x8xf32>
    %46 = vector.broadcast %45 : vector<1x8xf32> to vector<2x8xf32>
    %47 = arith.addf %43, %46 : vector<2x8xf32>
    %c0_52 = arith.constant 0 : index
    %c0_53 = arith.constant 0 : index
    %c0_54 = arith.constant 0 : index
    %48 = vector.load %arg8[%c0_52, %c0_53, %c0_54] : memref<1x2x8xf32, #tpu.memory_space<vmem>>, vector<1x2x8xf32>
    %49 = vector.shape_cast %48 : vector<1x2x8xf32> to vector<2x8xf32>
    %50 = vector.shape_cast %47 : vector<2x8xf32> to vector<1x2x8xf32>
    tpu.vector_store %arg8[%c0_52, %c0_53, %c0_54], %50 {strides = array<i32>} : memref<1x2x8xf32, #tpu.memory_space<vmem>>, vector<1x2x8xf32>,
    return
  }
  func.func @transform_0(%arg0: i32) -> (i32, i32, i32) {
    %c0_i32 = arith.constant 0 : i32
    %c0_i32_0 = arith.constant 0 : i32
    %c0_i32_1 = arith.constant 0 : i32
    return %arg0, %c0_i32, %c0_i32_0 : i32, i32, i32
  }
  func.func @transform_1(%arg0: i32) -> (i32, i32, i32) {
    %c0_i32 = arith.constant 0 : i32
    %c0_i32_0 = arith.constant 0 : i32
    %c0_i32_1 = arith.constant 0 : i32
    return %arg0, %c0_i32, %c0_i32_0 : i32, i32, i32
  }
  func.func @transform_2(%arg0: i32) -> (i32, i32, i32) {
    %c0_i32 = arith.constant 0 : i32
    %c0_i32_0 = arith.constant 0 : i32
    %c0_i32_1 = arith.constant 0 : i32
    return %arg0, %c0_i32, %c0_i32_0 : i32, i32, i32
  }
  func.func @transform_3(%arg0: i32) -> (i32, i32, i32) {
    %c0_i32 = arith.constant 0 : i32
    %c0_i32_0 = arith.constant 0 : i32
    %c0_i32_1 = arith.constant 0 : i32
    return %arg0, %c0_i32, %c0_i32_0 : i32, i32, i32
  }
  func.func @transform_4(%arg0: i32) -> (i32, i32, i32) {
    %c0_i32 = arith.constant 0 : i32
    %c0_i32_0 = arith.constant 0 : i32
    %c0_i32_1 = arith.constant 0 : i32
    return %arg0, %c0_i32, %c0_i32_0 : i32, i32, i32
  }
  func.func @transform_5(%arg0: i32) -> (i32, i32, i32) {
    %c0_i32 = arith.constant 0 : i32
    %c0_i32_0 = arith.constant 0 : i32
    %c0_i32_1 = arith.constant 0 : i32
    return %arg0, %c0_i32, %c0_i32_0 : i32, i32, i32
  }
  func.func @transform_6(%arg0: i32) -> (i32, i32, i32) {
    %c0_i32 = arith.constant 0 : i32
    %c0_i32_0 = arith.constant 0 : i32
    %c0_i32_1 = arith.constant 0 : i32
    return %arg0, %c0_i32, %c0_i32_0 : i32, i32, i32
  }
  func.func @transform_7(%arg0: i32) -> (i32, i32, i32) {
    %c0_i32 = arith.constant 0 : i32
    %c0_i32_0 = arith.constant 0 : i32
    %c0_i32_1 = arith.constant 0 : i32
    return %arg0, %c0_i32, %c0_i32_0 : i32, i32, i32
  }
}

</mosaic_0001>

<llo_original>
// kernel: tpu_custom_call.1
$region0: #{tpu_custom_call.1}
  #allocation0 [shape = 'u32[]', space=smem, size = 0x4, offset = 0x4, fixed_abs, tag = 'smem constant byte address 0x4 - core index']
  #allocation1 [shape = 'u32[144,128]{1,0:T(1,128)}', space=vmem, size = 0x12000, scoped, tag = 'internal scratch']
  #allocation2 [shape = 'f32[2,18,128]{2,1,0:T(8,128)}', space=vmem, size = 0x6000, scoped, tag = 'scratch operand']
  %s0 = inlined_call_operand.vmem [shape: f32[2,32,128], index: 0, kind: input, shape index: {}]
  %s1 = inlined_call_operand.hbm [shape: f32[2,384,128], index: 1, kind: input, shape index: {}]
  %s2 = inlined_call_operand.vmem [shape: f32[2,1,128], index: 2, kind: input, shape index: {}]
  %s3 = inlined_call_operand.hbm [shape: f32[2,384,128], index: 3, kind: input, shape index: {}]
  %s4 = inlined_call_operand.vmem [shape: f32[2,1,128], index: 4, kind: input, shape index: {}]
  %s5 = inlined_call_operand.vmem [shape: f32[2,128,8], index: 5, kind: input, shape index: {}]
  %s6 = inlined_call_operand.vmem [shape: f32[2,1,8], index: 6, kind: input, shape index: {}]
  %s7 = inlined_call_operand.hbm [shape: f32[2,2,8], index: 7, kind: output, shape index: {}]
  %s8 = sld [smem:[#allocation0]]
  $region69: #{tpu_custom_call.1} parent=0
    _
  %s10 = ssub.s32 1, %s8
  %s11 = scalar_select 0, %s10, %s8
  $region1: #{tpu_custom_call.1} parent=0
    #allocation3 [shape = 'u8[393216]{0}', space=vmem, size = 0x60000, scoped, tag = 'input window, operand 1']
    #allocation4 [shape = 's32[2]{0}', space=sflag, size = 0x8, scoped, tag = 'scoped memory for tpu_custom_call.1']
    #allocation5 [shape = 's32[2]{0}', space=sflag, size = 0x8, scoped, tag = 'scoped memory for tpu_custom_call.1']
    #allocation6 [shape = 'u8[393216]{0}', space=vmem, size = 0x60000, scoped, tag = 'input window, operand 3']
    #allocation7 [shape = 's32[2]{0}', space=sflag, size = 0x8, scoped, tag = 'scoped memory for tpu_custom_call.1']
    #allocation8 [shape = 'u8[2048]{0}', space=vmem, size = 0x800, scoped, tag = 'output window, operand 0']
    %12 = vsyncpa [#allocation4], 0
    %s13 = scalar_lea.sflag [#allocation4], 1
    %14 = vsyncpa %s13, 0
    %15 = vsyncpa [#allocation7], 0
    %s16 = scalar_lea.sflag [#allocation7], 1
    %17 = vsyncpa %s16, 0
    %18 = vsyncpa [#allocation5], 0
    %s19 = scalar_lea.sflag [#allocation5], 1
    %20 = vsyncpa %s19, 0
    loop: start=0, step=1, limit=4
    $region2: #{tpu_custom_call.1} parent=1 // loop_pre_header
      _
    $region3: #{tpu_custom_call.1} parent=1 // loop_header
      %s22 = sphi 0, %s26
      %p23 = scmp.ge.s32.totalorder %s22, 4
      %s32 = sphi 0, %s34
      %s35 = sphi 0, %s32
      %s36 = sphi 0, %s35
      %s52 = sphi 0, %s36
      %s58 = sphi 0, %s60
      %s61 = sphi 0, %s58
      %s62 = sphi 0, %s61
      %s78 = sphi 0, %s62
      %s84 = sphi 0, %s86
      %s87 = sphi 0, %s84
      %s88 = sphi 0, %s87
      %s104 = sphi 0, %s88
      %s110 = sphi 0, %s112
      %s113 = sphi 0, %s110
      %s114 = sphi 0, %s113
      %s130 = sphi 0, %s114
      %s136 = sphi 0, %s138
      %s139 = sphi 0, %s136
      %s140 = sphi 0, %s139
      %s156 = sphi 0, %s140
      %s162 = sphi 0, %s164
      %s165 = sphi 0, %s162
      %s166 = sphi 0, %s165
      %s182 = sphi 0, %s166
      %s188 = sphi 0, %s190
      %s191 = sphi 0, %s188
      %s192 = sphi 0, %s191
      %s208 = sphi 0, %s192
      %s214 = sphi 0, %s216
      %s217 = sphi 0, %s214
      %s218 = sphi 0, %s217
      %s234 = sphi 0, %s218
    $region4: #{tpu_custom_call.1} parent=1 // loop_header_branch
      %25 = sbr.rel (%p23) target = $region8
    $region5: #{tpu_custom_call.1} parent=1 // loop_body
      %s27 = ssub.s32 %s22, 1
      %s28 = ssub.s32 %s22, 2
      %s29 = sadd.s32 %s22, 1
      %s30 = ssub.s32 %s22, %s29
      %p31 = scmp.eq.s32.totalorder %s30, 0
      %s33 = sadd.s32 %s32, 1
      %s34 = scalar_select %p31, %s32, %s33
      %p37 = pneg %p31
      %p38 = scmp.eq.s32.totalorder %s22, 1
      %p39 = por %p37, %p38
      %p40 = scmp.ne.s32.totalorder %s32, %s35
      %p41 = scmp.eq.s32.totalorder %s22, 0
      %p42 = por %p40, %p41
      %p43 = scmp.ne.s32.totalorder %s32, %s35
      %p44 = scmp.eq.s32.totalorder %s27, 1
      %p45 = por %p43, %p44
      %p46 = scmp.ne.s32.totalorder %s35, %s36
      %p47 = scmp.eq.s32.totalorder %s27, 0
      %p48 = por %p46, %p47
      %p49 = scmp.ne.s32.totalorder %s35, %s36
      %p50 = scmp.eq.s32.totalorder %s28, 1
      %p51 = por %p49, %p50
      %p53 = scmp.ne.s32.totalorder %s36, %s52
      %p54 = scmp.eq.s32.totalorder %s28, 0
      %p55 = por %p53, %p54
      %s56 = ssub.s32 %s22, %s29
      %p57 = scmp.eq.s32.totalorder %s56, 0
      %s59 = sadd.s32 %s58, 1
      %s60 = scalar_select %p57, %s58, %s59
      %p63 = pneg %p57
      %p64 = scmp.eq.s32.totalorder %s22, 1
      %p65 = por %p63, %p64
      %p66 = scmp.ne.s32.totalorder %s58, %s61
      %p67 = scmp.eq.s32.totalorder %s22, 0
      %p68 = por %p66, %p67
      %p69 = scmp.ne.s32.totalorder %s58, %s61
      %p70 = scmp.eq.s32.totalorder %s27, 1
      %p71 = por %p69, %p70
      %p72 = scmp.ne.s32.totalorder %s61, %s62
      %p73 = scmp.eq.s32.totalorder %s27, 0
      %p74 = por %p72, %p73
      %p75 = scmp.ne.s32.totalorder %s61, %s62
      %p76 = scmp.eq.s32.totalorder %s28, 1
      %p77 = por %p75, %p76
      %p79 = scmp.ne.s32.totalorder %s62, %s78
      %p80 = scmp.eq.s32.totalorder %s28, 0
      %p81 = por %p79, %p80
      %s82 = ssub.s32 %s22, %s29
      %p83 = scmp.eq.s32.totalorder %s82, 0
      %s85 = sadd.s32 %s84, 1
      %s86 = scalar_select %p83, %s84, %s85
      %p89 = pneg %p83
      %p90 = scmp.eq.s32.totalorder %s22, 1
      %p91 = por %p89, %p90
      %p92 = scmp.ne.s32.totalorder %s84, %s87
      %p93 = scmp.eq.s32.totalorder %s22, 0
      %p94 = por %p92, %p93
      %p95 = scmp.ne.s32.totalorder %s84, %s87
      %p96 = scmp.eq.s32.totalorder %s27, 1
      %p97 = por %p95, %p96
      %p98 = scmp.ne.s32.totalorder %s87, %s88
      %p99 = scmp.eq.s32.totalorder %s27, 0
      %p100 = por %p98, %p99
      %p101 = scmp.ne.s32.totalorder %s87, %s88
      %p102 = scmp.eq.s32.totalorder %s28, 1
      %p103 = por %p101, %p102
      %p105 = scmp.ne.s32.totalorder %s88, %s104
      %p106 = scmp.eq.s32.totalorder %s28, 0
      %p107 = por %p105, %p106
      %s108 = ssub.s32 %s22, %s29
      %p109 = scmp.eq.s32.totalorder %s108, 0
      %s111 = sadd.s32 %s110, 1
      %s112 = scalar_select %p109, %s110, %s111
      %p115 = pneg %p109
      %p116 = scmp.eq.s32.totalorder %s22, 1
      %p117 = por %p115, %p116
      %p118 = scmp.ne.s32.totalorder %s110, %s113
      %p119 = scmp.eq.s32.totalorder %s22, 0
      %p120 = por %p118, %p119
      %p121 = scmp.ne.s32.totalorder %s110, %s113
      %p122 = scmp.eq.s32.totalorder %s27, 1
      %p123 = por %p121, %p122
      %p124 = scmp.ne.s32.totalorder %s113, %s114
      %p125 = scmp.eq.s32.totalorder %s27, 0
      %p126 = por %p124, %p125
      %p127 = scmp.ne.s32.totalorder %s113, %s114
      %p128 = scmp.eq.s32.totalorder %s28, 1
      %p129 = por %p127, %p128
      %p131 = scmp.ne.s32.totalorder %s114, %s130
      %p132 = scmp.eq.s32.totalorder %s28, 0
      %p133 = por %p131, %p132
      %s134 = ssub.s32 %s22, %s29
      %p135 = scmp.eq.s32.totalorder %s134, 0
      %s137 = sadd.s32 %s136, 1
      %s138 = scalar_select %p135, %s136, %s137
      %p141 = pneg %p135
      %p142 = scmp.eq.s32.totalorder %s22, 1
      %p143 = por %p141, %p142
      %p144 = scmp.ne.s32.totalorder %s136, %s139
      %p145 = scmp.eq.s32.totalorder %s22, 0
      %p146 = por %p144, %p145
      %p147 = scmp.ne.s32.totalorder %s136, %s139
      %p148 = scmp.eq.s32.totalorder %s27, 1
      %p149 = por %p147, %p148
      %p150 = scmp.ne.s32.totalorder %s139, %s140
      %p151 = scmp.eq.s32.totalorder %s27, 0
      %p152 = por %p150, %p151
      %p153 = scmp.ne.s32.totalorder %s139, %s140
      %p154 = scmp.eq.s32.totalorder %s28, 1
      %p155 = por %p153, %p154
      %p157 = scmp.ne.s32.totalorder %s140, %s156
      %p158 = scmp.eq.s32.totalorder %s28, 0
      %p159 = por %p157, %p158
      %s160 = ssub.s32 %s22, %s29
      %p161 = scmp.eq.s32.totalorder %s160, 0
      %s163 = sadd.s32 %s162, 1
      %s164 = scalar_select %p161, %s162, %s163
      %p167 = pneg %p161
      %p168 = scmp.eq.s32.totalorder %s22, 1
      %p169 = por %p167, %p168
      %p170 = scmp.ne.s32.totalorder %s162, %s165
      %p171 = scmp.eq.s32.totalorder %s22, 0
      %p172 = por %p170, %p171
      %p173 = scmp.ne.s32.totalorder %s162, %s165
      %p174 = scmp.eq.s32.totalorder %s27, 1
      %p175 = por %p173, %p174
      %p176 = scmp.ne.s32.totalorder %s165, %s166
      %p177 = scmp.eq.s32.totalorder %s27, 0
      %p178 = por %p176, %p177
      %p179 = scmp.ne.s32.totalorder %s165, %s166
      %p180 = scmp.eq.s32.totalorder %s28, 1
      %p181 = por %p179, %p180
      %p183 = scmp.ne.s32.totalorder %s166, %s182
      %p184 = scmp.eq.s32.totalorder %s28, 0
      %p185 = por %p183, %p184
      %s186 = ssub.s32 %s22, %s29
      %p187 = scmp.eq.s32.totalorder %s186, 0
      %s189 = sadd.s32 %s188, 1
      %s190 = scalar_select %p187, %s188, %s189
      %p193 = pneg %p187
      %p194 = scmp.eq.s32.totalorder %s22, 1
      %p195 = por %p193, %p194
      %p196 = scmp.ne.s32.totalorder %s188, %s191
      %p197 = scmp.eq.s32.totalorder %s22, 0
      %p198 = por %p196, %p197
      %p199 = scmp.ne.s32.totalorder %s188, %s191
      %p200 = scmp.eq.s32.totalorder %s27, 1
      %p201 = por %p199, %p200
      %p202 = scmp.ne.s32.totalorder %s191, %s192
      %p203 = scmp.eq.s32.totalorder %s27, 0
      %p204 = por %p202, %p203
      %p205 = scmp.ne.s32.totalorder %s191, %s192
      %p206 = scmp.eq.s32.totalorder %s28, 1
      %p207 = por %p205, %p206
      %p209 = scmp.ne.s32.totalorder %s192, %s208
      %p210 = scmp.eq.s32.totalorder %s28, 0
      %p211 = por %p209, %p210
      %s212 = ssub.s32 %s22, %s29
      %p213 = scmp.eq.s32.totalorder %s212, 0
      %s215 = sadd.s32 %s214, 1
      %s216 = scalar_select %p213, %s214, %s215
      %p219 = pneg %p213
      %p220 = scmp.eq.s32.totalorder %s22, 1
      %p221 = por %p219, %p220
      %p222 = scmp.ne.s32.totalorder %s214, %s217
      %p223 = scmp.eq.s32.totalorder %s22, 0
      %p224 = por %p222, %p223
      %p225 = scmp.ne.s32.totalorder %s214, %s217
      %p226 = scmp.eq.s32.totalorder %s27, 1
      %p227 = por %p225, %p226
      %p228 = scmp.ne.s32.totalorder %s217, %s218
      %p229 = scmp.eq.s32.totalorder %s27, 0
      %p230 = por %p228, %p229
      %p231 = scmp.ne.s32.totalorder %s217, %s218
      %p232 = scmp.eq.s32.totalorder %s28, 1
      %p233 = por %p231, %p232
      %p235 = scmp.ne.s32.totalorder %s218, %s234
      %p236 = scmp.eq.s32.totalorder %s28, 0
      %p237 = por %p235, %p236
      %p238 = scmp.le.s32.totalorder 1, %s22
      %p239 = scmp.lt.s32.totalorder %s22, 3
      %p240 = pnand %p238, %p239
      %p241 = pneg %p240
      // Predicated region
      $region9: #{tpu_custom_call.1} parent=5 // pred_check
        _
      $region10: #{tpu_custom_call.1} parent=5 // pred_check_branch
        %243 = sbr.rel (%p240) target = $region12
      $region11: #{tpu_custom_call.1} parent=5 // pred_region
        %s244 = ssub.s32 %s22, 1
      $region12: #{tpu_custom_call.1} parent=5 // pred_fallthru
        _
      %p245 = scmp.lt.s32.totalorder %s22, 2
      // Predicated region
      $region13: #{tpu_custom_call.1} parent=5 // pred_check
        %p246 = pneg %p245
      $region14: #{tpu_custom_call.1} parent=5 // pred_check_branch
        %248 = sbr.rel (%p246) target = $region16
      $region15: #{tpu_custom_call.1} parent=5 // pred_region
        // Predicated region
        $region17: #{tpu_custom_call.1} parent=15 // pred_check
          %p249 = pneg %p42
        $region18: #{tpu_custom_call.1} parent=15 // pred_check_branch
          %251 = sbr.rel (%p249) target = $region20
        $region19: #{tpu_custom_call.1} parent=15 // pred_region
          %p252 = scmp.lt.s32.totalorder %s22, 1
          %s253 = scalar_select %p252, %s22, 1
          %s254 = smul.addr %s253, 4
          %s255 = smul.addr %s254, 8
          %s256 = scalar_lea.vmem %s0, %s255
        $region20: #{tpu_custom_call.1} parent=15 // pred_fallthru
          _
        // Predicated region
        $region21: #{tpu_custom_call.1} parent=15 // pred_check
          %p257 = pneg %p68
        $region22: #{tpu_custom_call.1} parent=15 // pred_check_branch
          %259 = sbr.rel (%p257) target = $region24
        $region23: #{tpu_custom_call.1} parent=15 // pred_region
          %s260 = sand.u32 %s58, 1
          %s261 = scalar_lea.sflag [#allocation4], %s260
          %s262 = sand.u32 %s58, 1
          %s263 = smul.addr %s262, 384
          %s264 = scalar_lea.vmem [#allocation3], %s263
          %s266 = ssub.s32 6144, 6144
          %267 = vsyncadd %s261, %s266
          %s268 = smul.addr %s22, 48
          %s269 = smul.addr %s268, 128
          %s270 = scalar_lea.hbm %s1, %s269
          %s271 = sshll.u32 %s264, 4
          %s272 = int_to_ptr.vmem [resolvable:$true] %s271
          %277 = dma.hbm_to_vmem [thread:$0]  %s270, 6144, %s272, %s261, 128, 128, 8
        $region24: #{tpu_custom_call.1} parent=15 // pred_fallthru
          _
        // Predicated region
        $region25: #{tpu_custom_call.1} parent=15 // pred_check
          %p278 = pneg %p94
        $region26: #{tpu_custom_call.1} parent=15 // pred_check_branch
          %280 = sbr.rel (%p278) target = $region28
        $region27: #{tpu_custom_call.1} parent=15 // pred_region
          %p281 = scmp.lt.s32.totalorder %s22, 1
          %s282 = scalar_select %p281, %s22, 1
          %s283 = scalar_lea.vmem %s2, %s282
        $region28: #{tpu_custom_call.1} parent=15 // pred_fallthru
          _
        // Predicated region
        $region29: #{tpu_custom_call.1} parent=15 // pred_check
          %p284 = pneg %p120
        $region30: #{tpu_custom_call.1} parent=15 // pred_check_branch
          %286 = sbr.rel (%p284) target = $region32
        $region31: #{tpu_custom_call.1} parent=15 // pred_region
          %s287 = sand.u32 %s110, 1
          %s288 = scalar_lea.sflag [#allocation7], %s287
          %s289 = sand.u32 %s110, 1
          %s290 = smul.addr %s289, 384
          %s291 = scalar_lea.vmem [#allocation6], %s290
          %s293 = ssub.s32 6144, 6144
          %294 = vsyncadd %s288, %s293
          %s295 = smul.addr %s22, 48
          %s296 = smul.addr %s295, 128
          %s297 = scalar_lea.hbm %s3, %s296
          %s298 = sshll.u32 %s291, 4
          %s299 = int_to_ptr.vmem [resolvable:$true] %s298
          %304 = dma.hbm_to_vmem [thread:$0]  %s297, 6144, %s299, %s288, 128, 128, 8
        $region32: #{tpu_custom_call.1} parent=15 // pred_fallthru
          _
        // Predicated region
        $region33: #{tpu_custom_call.1} parent=15 // pred_check
          %p305 = pneg %p146
        $region34: #{tpu_custom_call.1} parent=15 // pred_check_branch
          %307 = sbr.rel (%p305) target = $region36
        $region35: #{tpu_custom_call.1} parent=15 // pred_region
          %p308 = scmp.lt.s32.totalorder %s22, 1
          %s309 = scalar_select %p308, %s22, 1
          %s310 = scalar_lea.vmem %s4, %s309
        $region36: #{tpu_custom_call.1} parent=15 // pred_fallthru
          _
        // Predicated region
        $region37: #{tpu_custom_call.1} parent=15 // pred_check
          %p311 = pneg %p172
        $region38: #{tpu_custom_call.1} parent=15 // pred_check_branch
          %313 = sbr.rel (%p311) target = $region40
        $region39: #{tpu_custom_call.1} parent=15 // pred_region
          %p314 = scmp.lt.s32.totalorder %s22, 1
          %s315 = scalar_select %p314, %s22, 1
          %s316 = smul.addr %s315, 16
          %s317 = smul.addr %s316, 8
          %s318 = scalar_lea.vmem %s5, %s317
        $region40: #{tpu_custom_call.1} parent=15 // pred_fallthru
          _
        // Predicated region
        $region41: #{tpu_custom_call.1} parent=15 // pred_check
          %p319 = pneg %p198
        $region42: #{tpu_custom_call.1} parent=15 // pred_check_branch
          %321 = sbr.rel (%p319) target = $region44
        $region43: #{tpu_custom_call.1} parent=15 // pred_region
          %p322 = scmp.lt.s32.totalorder %s22, 1
          %s323 = scalar_select %p322, %s22, 1
          %s324 = scalar_lea.vmem %s6, %s323
        $region44: #{tpu_custom_call.1} parent=15 // pred_fallthru
          _
      $region16: #{tpu_custom_call.1} parent=5 // pred_fallthru
        _
      %p325 = scmp.le.s32.totalorder 1, %s22
      %p326 = scmp.lt.s32.totalorder %s22, 3
      %p327 = pnand %p325, %p326
      %p328 = pneg %p327
      // Predicated region
      $region45: #{tpu_custom_call.1} parent=5 // pred_check
        _
      $region46: #{tpu_custom_call.1} parent=5 // pred_check_branch
        %330 = sbr.rel (%p327) target = $region48
      $region47: #{tpu_custom_call.1} parent=5 // pred_region
        %s331 = ssub.s32 %s22, 1
        %s332 = sand.u32 %s61, 1
        %s333 = scalar_lea.sflag [#allocation4], %s332
        %s334 = sand.u32 %s61, 1
        %s335 = smul.addr %s334, 384
        %s336 = scalar_lea.vmem [#allocation3], %s335
        // Predicated region
        $region49: #{tpu_custom_call.1} parent=47 // pred_check
          %p337 = pneg %p74
        $region50: #{tpu_custom_call.1} parent=47 // pred_check_branch
          %339 = sbr.rel (%p337) target = $region52
        $region51: #{tpu_custom_call.1} parent=47 // pred_region
          %340 = dma.done %s333, 6144
        $region52: #{tpu_custom_call.1} parent=47 // pred_fallthru
          _
        %s341 = sand.u32 %s113, 1
        %s342 = scalar_lea.sflag [#allocation7], %s341
        %s343 = sand.u32 %s113, 1
        %s344 = smul.addr %s343, 384
        %s345 = scalar_lea.vmem [#allocation6], %s344
        // Predicated region
        $region53: #{tpu_custom_call.1} parent=47 // pred_check
          %p346 = pneg %p126
        $region54: #{tpu_custom_call.1} parent=47 // pred_check_branch
          %348 = sbr.rel (%p346) target = $region56
        $region55: #{tpu_custom_call.1} parent=47 // pred_region
          %349 = dma.done %s342, 6144
        $region56: #{tpu_custom_call.1} parent=47 // pred_fallthru
          _
        %p350 = scmp.lt.s32.totalorder %s27, 1
        %s351 = scalar_select %p350, %s27, 1
        %s352 = smul.addr %s351, 4
        %s353 = smul.addr %s352, 8
        %s354 = scalar_lea.vmem %s0, %s353
        %p355 = pneg %p48
        %p356 = pneg %p45
        %s357 = sand.u32 %s61, 1
        %s358 = scalar_lea.sflag [#allocation4], %s357
        %s359 = sand.u32 %s61, 1
        %s360 = smul.addr %s359, 384
        %s361 = scalar_lea.vmem [#allocation3], %s360
        %p362 = pneg %p74
        %p363 = pneg %p71
        %p364 = scmp.lt.s32.totalorder %s27, 1
        %s365 = scalar_select %p364, %s27, 1
        %s366 = scalar_lea.vmem %s2, %s365
        %p367 = pneg %p100
        %p368 = pneg %p97
        %s369 = sand.u32 %s113, 1
        %s370 = scalar_lea.sflag [#allocation7], %s369
        %s371 = sand.u32 %s113, 1
        %s372 = smul.addr %s371, 384
        %s373 = scalar_lea.vmem [#allocation6], %s372
        %p374 = pneg %p126
        %p375 = pneg %p123
        %p376 = scmp.lt.s32.totalorder %s27, 1
        %s377 = scalar_select %p376, %s27, 1
        %s378 = scalar_lea.vmem %s4, %s377
        %p379 = pneg %p152
        %p380 = pneg %p149
        %p381 = scmp.lt.s32.totalorder %s27, 1
        %s382 = scalar_select %p381, %s27, 1
        %s383 = smul.addr %s382, 16
        %s384 = smul.addr %s383, 8
        %s385 = scalar_lea.vmem %s5, %s384
        %p386 = pneg %p178
        %p387 = pneg %p175
        %p388 = scmp.lt.s32.totalorder %s27, 1
        %s389 = scalar_select %p388, %s27, 1
        %s390 = scalar_lea.vmem %s6, %s389
        %p391 = pneg %p204
        %p392 = pneg %p201
        %p393 = pneg %p230
        %p394 = pneg %p227
        %s395 = sand.u32 %s217, 1
        %s396 = scalar_lea.sflag [#allocation5], %s395
        %s397 = sand.u32 %s217, 1
        %s398 = smul.addr %s397, 2
        %s399 = scalar_lea.vmem [#allocation8], %s398
        %p400 = scmp.lt.s32.totalorder %s27, 1
        %s401 = scalar_select %p400, %s27, 1
        %s402 = smul.addr %s401, 4
        %s403 = smul.addr %s402, 8
        %s404 = scalar_lea.vmem %s0, %s403
        %p405 = scmp.lt.s32.totalorder %s27, 1
        %s406 = scalar_select %p405, %s27, 1
        %s407 = scalar_lea.vmem %s2, %s406
        %p408 = scmp.lt.s32.totalorder %s27, 1
        %s409 = scalar_select %p408, %s27, 1
        %s410 = scalar_lea.vmem %s4, %s409
        %p411 = scmp.lt.s32.totalorder %s27, 1
        %s412 = scalar_select %p411, %s27, 1
        %s413 = smul.addr %s412, 16
        %s414 = smul.addr %s413, 8
        %s415 = scalar_lea.vmem %s5, %s414
        %p416 = scmp.lt.s32.totalorder %s27, 1
        %s417 = scalar_select %p416, %s27, 1
        %s418 = scalar_lea.vmem %s6, %s417
        %v419 = vld [vmem:[%s404] sm:$0xff]
        %v420 = vld [vmem:[%s404 + $0x8] sm:$0xff]
        %v421 = vld [vmem:[%s404 + $0x10] sm:$0xff]
        %v422 = vld [vmem:[%s404 + $0x18] sm:$0xff]
        %423 = vst [vmem:[#allocation2] sm:$0xff] 0.0
        %424 = vst [vmem:[#allocation2 + $0x8] sm:$0xff] 0.0
        %425 = vst [vmem:[#allocation2 + $0x10] sm:$0x3] 0.0
        %426 = vst [vmem:[#allocation2 + $0x18] sm:$0xff] 0.0
        %427 = vst [vmem:[#allocation2 + $0x20] sm:$0xff] 0.0
        %428 = vst [vmem:[#allocation2 + $0x28] sm:$0x3] 0.0
        %v429 = vld [vmem:[%s407] sm:$0x1]
        %430 = vst [vmem:[#allocation2 + $0x1] sm:$0xff] %v419
        %431 = vst [vmem:[#allocation2 + $0x9] sm:$0xff] %v420
        %432 = vst [vmem:[#allocation2 + $0x19] sm:$0xff] %v421
        %433 = vst [vmem:[#allocation2 + $0x21] sm:$0xff] %v422
        %v434 = vld [vmem:[#allocation2] sm:$0xff]
        %v435 = vld [vmem:[#allocation2 + $0x8] sm:$0xff]
        %v436 = vld [vmem:[#allocation2 + $0x18] sm:$0xff]
        %v437 = vld [vmem:[#allocation2 + $0x20] sm:$0xff]
        %v438 = vld [vmem:[#allocation2 + $0x1] sm:$0xff]
        %v439 = vld [vmem:[#allocation2 + $0x9] sm:$0xff]
        %v440 = vld [vmem:[#allocation2 + $0x19] sm:$0xff]
        %v441 = vld [vmem:[#allocation2 + $0x21] sm:$0xff]
        %v442 = vld [vmem:[#allocation2 + $0x2] sm:$0xff]
        %v443 = vld [vmem:[#allocation2 + $0xa] sm:$0xff]
        %v444 = vld [vmem:[#allocation2 + $0x1a] sm:$0xff]
        %v445 = vld [vmem:[#allocation2 + $0x22] sm:$0xff]
        %v446 = vld [vmem:[%s336] sm:$0xff]
        %v447 = vld [vmem:[%s336 + $0x8] sm:$0xff]
        %v448 = vld [vmem:[%s336 + $0x10] sm:$0xff]
        %v449 = vld [vmem:[%s336 + $0x18] sm:$0xff]
        %v450 = vld [vmem:[%s336 + $0x20] sm:$0xff]
        %v451 = vld [vmem:[%s336 + $0x28] sm:$0xff]
        %v452 = vld [vmem:[%s336 + $0x30] sm:$0xff]
        %v453 = vld [vmem:[%s336 + $0x38] sm:$0xff]
        %v454 = vld [vmem:[%s336 + $0x40] sm:$0xff]
        %v455 = vld [vmem:[%s336 + $0x48] sm:$0xff]
        %v456 = vld [vmem:[%s336 + $0x50] sm:$0xff]
        %v457 = vld [vmem:[%s336 + $0x58] sm:$0xff]
        %v458 = vld [vmem:[%s336 + $0x60] sm:$0xff]
        %v459 = vld [vmem:[%s336 + $0x68] sm:$0xff]
        %v460 = vld [vmem:[%s336 + $0x70] sm:$0xff]
        %v461 = vld [vmem:[%s336 + $0x78] sm:$0xff]
        %v462 = vld [vmem:[%s336 + $0x80] sm:$0xff]
        %v463 = vld [vmem:[%s336 + $0x88] sm:$0xff]
        %v464 = vld [vmem:[%s336 + $0x90] sm:$0xff]
        %v465 = vld [vmem:[%s336 + $0x98] sm:$0xff]
        %v466 = vld [vmem:[%s336 + $0xa0] sm:$0xff]
        %v467 = vld [vmem:[%s336 + $0xa8] sm:$0xff]
        %v468 = vld [vmem:[%s336 + $0xb0] sm:$0xff]
        %v469 = vld [vmem:[%s336 + $0xb8] sm:$0xff]
        %v470 = vld [vmem:[%s336 + $0xc0] sm:$0xff]
        %v471 = vld [vmem:[%s336 + $0xc8] sm:$0xff]
        %v472 = vld [vmem:[%s336 + $0xd0] sm:$0xff]
        %v473 = vld [vmem:[%s336 + $0xd8] sm:$0xff]
        %v474 = vld [vmem:[%s336 + $0xe0] sm:$0xff]
        %v475 = vld [vmem:[%s336 + $0xe8] sm:$0xff]
        %v476 = vld [vmem:[%s336 + $0xf0] sm:$0xff]
        %v477 = vld [vmem:[%s336 + $0xf8] sm:$0xff]
        %v478 = vld [vmem:[%s336 + $0x100] sm:$0xff]
        %v479 = vld [vmem:[%s336 + $0x108] sm:$0xff]
        %v480 = vld [vmem:[%s336 + $0x110] sm:$0xff]
        %v481 = vld [vmem:[%s336 + $0x118] sm:$0xff]
        %v482 = vld [vmem:[%s336 + $0x120] sm:$0xff]
        %v483 = vld [vmem:[%s336 + $0x128] sm:$0xff]
        %v484 = vld [vmem:[%s336 + $0x130] sm:$0xff]
        %v485 = vld [vmem:[%s336 + $0x138] sm:$0xff]
        %v486 = vld [vmem:[%s336 + $0x140] sm:$0xff]
        %v487 = vld [vmem:[%s336 + $0x148] sm:$0xff]
        %v488 = vld [vmem:[%s336 + $0x150] sm:$0xff]
        %v489 = vld [vmem:[%s336 + $0x158] sm:$0xff]
        %v490 = vld [vmem:[%s336 + $0x160] sm:$0xff]
        %v491 = vld [vmem:[%s336 + $0x168] sm:$0xff]
        %v492 = vld [vmem:[%s336 + $0x170] sm:$0xff]
        %v493 = vld [vmem:[%s336 + $0x178] sm:$0xff]
        %v495 = vlaneseq
        %v496 = vshrl.u32 %v495, 7
        %v497 = vsub.s32 0, %v496
        %v498 = vrot.slane %v429, %v497
        %500 = vmatprep.subr.mxu0 0.0
        %501 = vmatpush1.msra.mxu0 %v446
        %502 = vmatprep.subr.mxu0 0.0
        %503 = vmatpush1.msra.mxu0 %v447
        %504 = vmatprep.subr.mxu0 0.0
        %505 = vmatpush1.msra.mxu0 %v448
        %506 = vmatprep.subr.mxu0 0.0
        %507 = vmatpush1.msra.mxu0 %v449
        %508 = vmatprep.subr.mxu0 0.0
        %509 = vmatpush1.msra.mxu0 %v450
        %510 = vmatprep.subr.mxu0 0.0
        %511 = vmatpush1.msra.mxu0 %v451
        %512 = vmatprep.subr.mxu0 0.0
        %513 = vmatpush1.msra.mxu0 %v452
        %514 = vmatprep.subr.mxu0 0.0
        %515 = vmatpush1.msra.mxu0 %v453
        %516 = vmatprep.subr.mxu0 0.0
        %517 = vmatpush1.msra.mxu0 %v454
        %518 = vmatprep.subr.mxu0 0.0
        %519 = vmatpush1.msra.mxu0 %v455
        %520 = vmatprep.subr.mxu0 0.0
        %521 = vmatpush1.msra.mxu0 %v456
        %522 = vmatprep.subr.mxu0 0.0
        %523 = vmatpush1.msra.mxu0 %v457
        %524 = vmatprep.subr.mxu0 0.0
        %525 = vmatpush1.msra.mxu0 %v458
        %526 = vmatprep.subr.mxu0 0.0
        %527 = vmatpush1.msra.mxu0 %v459
        %528 = vmatprep.subr.mxu0 0.0
        %529 = vmatpush1.msra.mxu0 %v460
        %530 = vmatprep.subr.mxu0 0.0
        %531 = vmatpush1.msra.mxu0 %v461
        %532 = vmatprep.subr.mxu0 0.0
        %533 = vmatpush1.msra.mxu0 %v462
        %534 = vmatprep.subr.mxu0 0.0
        %535 = vmatpush1.msra.mxu0 %v463
        %536 = vmatprep.subr.mxu0 0.0
        %537 = vmatpush1.msra.mxu0 %v464
        %538 = vmatprep.subr.mxu0 0.0
        %539 = vmatpush1.msra.mxu0 %v465
        %540 = vmatprep.subr.mxu0 0.0
        %541 = vmatpush1.msra.mxu0 %v466
        %542 = vmatprep.subr.mxu0 0.0
        %543 = vmatpush1.msra.mxu0 %v467
        %544 = vmatprep.subr.mxu0 0.0
        %545 = vmatpush1.msra.mxu0 %v468
        %546 = vmatprep.subr.mxu0 0.0
        %547 = vmatpush1.msra.mxu0 %v469
        %548 = vmatprep.subr.mxu0 0.0
        %549 = vmatpush1.msra.mxu0 %v470
        %550 = vmatprep.subr.mxu0 0.0
        %551 = vmatpush1.msra.mxu0 %v471
        %552 = vmatprep.subr.mxu0 0.0
        %553 = vmatpush1.msra.mxu0 %v472
        %554 = vmatprep.subr.mxu0 0.0
        %555 = vmatpush1.msra.mxu0 %v473
        %556 = vmatprep.subr.mxu0 0.0
        %557 = vmatpush1.msra.mxu0 %v474
        %558 = vmatprep.subr.mxu0 0.0
        %559 = vmatpush1.msra.mxu0 %v475
        %560 = vmatprep.subr.mxu0 0.0
        %561 = vmatpush1.msra.mxu0 %v476
        %562 = vmatprep.subr.mxu0 0.0
        %563 = vmatpush1.msra.mxu0 %v477
        %564 = vmatprep.mubr.f32.mxu0 %v438
        %565 = vmatmul.mubr.f32.gmra.mrb[0].mxu0 %v434
        %v566 = vpop.f32.mrb[0].mxu0
        %v567 = vadd.f32 %v498, %v566
        %v568 = vpop.f32.mrb[0].mxu0
        %569 = vmatprep.mubr.f32.mxu0 %v439
        %570 = vmatmul.mubr.f32.gmra.mrb[0].mxu0 %v435
        %v571 = vpop.f32.mrb[0].mxu0
        %v572 = vadd.f32 %v498, %v571
        %v573 = vpop.f32.mrb[0].mxu0
        %574 = vmatprep.mubr.f32.mxu0 %v440
        %575 = vmatmul.mubr.f32.gmra.mrb[0].mxu0 %v436
        %v576 = vpop.f32.mrb[0].mxu0
        %v577 = vadd.f32 %v498, %v576
        %v578 = vpop.f32.mrb[0].mxu0
        %579 = vmatprep.mubr.f32.mxu0 %v441
        %580 = vmatmul.mubr.f32.gmra.mrb[0].mxu0 %v437
        %v581 = vpop.f32.mrb[0].mxu0
        %v582 = vadd.f32 %v498, %v581
        %v583 = vpop.f32.mrb[0].mxu0
        %584 = vdwg.mxu0
        %585 = vmatprep.subr.mxu0 0.0
        %586 = vmatpush1.msra.mxu0 %v478
        %587 = vmatprep.subr.mxu0 0.0
        %588 = vmatpush1.msra.mxu0 %v479
        %589 = vmatprep.subr.mxu0 0.0
        %590 = vmatpush1.msra.mxu0 %v480
        %591 = vmatprep.subr.mxu0 0.0
        %592 = vmatpush1.msra.mxu0 %v481
        %593 = vmatprep.subr.mxu0 0.0
        %594 = vmatpush1.msra.mxu0 %v482
        %595 = vmatprep.subr.mxu0 0.0
        %596 = vmatpush1.msra.mxu0 %v483
        %597 = vmatprep.subr.mxu0 0.0
        %598 = vmatpush1.msra.mxu0 %v484
        %599 = vmatprep.subr.mxu0 0.0
        %600 = vmatpush1.msra.mxu0 %v485
        %601 = vmatprep.subr.mxu0 0.0
        %602 = vmatpush1.msra.mxu0 %v486
        %603 = vmatprep.subr.mxu0 0.0
        %604 = vmatpush1.msra.mxu0 %v487
        %605 = vmatprep.subr.mxu0 0.0
        %606 = vmatpush1.msra.mxu0 %v488
        %607 = vmatprep.subr.mxu0 0.0
        %608 = vmatpush1.msra.mxu0 %v489
        %609 = vmatprep.subr.mxu0 0.0
        %610 = vmatpush1.msra.mxu0 %v490
        %611 = vmatprep.subr.mxu0 0.0
        %612 = vmatpush1.msra.mxu0 %v491
        %613 = vmatprep.subr.mxu0 0.0
        %614 = vmatpush1.msra.mxu0 %v492
        %615 = vmatprep.subr.mxu0 0.0
        %616 = vmatpush1.msra.mxu0 %v493
        %617 = vmatprep.subr.mxu0 0.0
        %618 = vmatpush1.msra.mxu0 0.0
        %619 = vmatprep.subr.mxu0 0.0
        %620 = vmatpush1.msra.mxu0 0.0
        %621 = vmatprep.subr.mxu0 0.0
        %622 = vmatpush1.msra.mxu0 0.0
        %623 = vmatprep.subr.mxu0 0.0
        %624 = vmatpush1.msra.mxu0 0.0
        %625 = vmatprep.subr.mxu0 0.0
        %626 = vmatpush1.msra.mxu0 0.0
        %627 = vmatprep.subr.mxu0 0.0
        %628 = vmatpush1.msra.mxu0 0.0
        %629 = vmatprep.subr.mxu0 0.0
        %630 = vmatpush1.msra.mxu0 0.0
        %631 = vmatprep.subr.mxu0 0.0
        %632 = vmatpush1.msra.mxu0 0.0
        %633 = vmatprep.subr.mxu0 0.0
        %634 = vmatpush1.msra.mxu0 0.0
        %635 = vmatprep.subr.mxu0 0.0
        %636 = vmatpush1.msra.mxu0 0.0
        %637 = vmatprep.subr.mxu0 0.0
        %638 = vmatpush1.msra.mxu0 0.0
        %639 = vmatprep.subr.mxu0 0.0
        %640 = vmatpush1.msra.mxu0 0.0
        %641 = vmatprep.subr.mxu0 0.0
        %642 = vmatpush1.msra.mxu0 0.0
        %643 = vmatprep.subr.mxu0 0.0
        %644 = vmatpush1.msra.mxu0 0.0
        %645 = vmatprep.subr.mxu0 0.0
        %646 = vmatpush1.msra.mxu0 0.0
        %647 = vmatprep.subr.mxu0 0.0
        %648 = vmatpush1.msra.mxu0 0.0
        %649 = vmatprep.mubr.f32.mxu0 0.0
        %650 = vmatmul.mubr.f32.gmra.mrb[0].mxu0 %v442
        %v651 = vpop.f32.mrb[0].mxu0
        %v652 = vadd.f32 %v567, %v651
        %v653 = vpop.f32.mrb[0].mxu0
        %654 = vmatprep.mubr.f32.mxu0 0.0
        %655 = vmatmul.mubr.f32.gmra.mrb[0].mxu0 %v443
        %v656 = vpop.f32.mrb[0].mxu0
        %v657 = vadd.f32 %v572, %v656
        %v658 = vpop.f32.mrb[0].mxu0
        %659 = vmatprep.mubr.f32.mxu0 0.0
        %660 = vmatmul.mubr.f32.gmra.mrb[0].mxu0 %v444
        %v661 = vpop.f32.mrb[0].mxu0
        %v662 = vadd.f32 %v577, %v661
        %v663 = vpop.f32.mrb[0].mxu0
        %664 = vmatprep.mubr.f32.mxu0 0.0
        %665 = vmatmul.mubr.f32.gmra.mrb[0].mxu0 %v445
        %v666 = vpop.f32.mrb[0].mxu0
        %v667 = vadd.f32 %v582, %v666
        %v668 = vpop.f32.mrb[0].mxu0
        %669 = vdwg.mxu0
        %v670 = vadd.f32 %v652, 0.0
        %v671 = vadd.f32 %v657, 0.0
        %v672 = vadd.f32 %v662, 0.0
        %v673 = vadd.f32 %v667, 0.0
        %v674 = vmax.f32 %v670, 0.0
        %v675 = vmax.f32 %v671, 0.0
        %v676 = vmax.f32 %v672, 0.0
        %v677 = vmax.f32 %v673, 0.0
        %v678 = vld [vmem:[%s410] sm:$0x1]
        %679 = vst [vmem:[#allocation2 + $0x1] sm:$0xff] %v674
        %680 = vst [vmem:[#allocation2 + $0x9] sm:$0xff] %v675
        %681 = vst [vmem:[#allocation2 + $0x19] sm:$0xff] %v676
        %682 = vst [vmem:[#allocation2 + $0x21] sm:$0xff] %v677
        %v683 = vld [vmem:[#allocation2] sm:$0xff]
        %v684 = vld [vmem:[#allocation2 + $0x8] sm:$0xff]
        %v685 = vld [vmem:[#allocation2 + $0x18] sm:$0xff]
        %v686 = vld [vmem:[#allocation2 + $0x20] sm:$0xff]
        %v687 = vld [vmem:[#allocation2 + $0x1] sm:$0xff]
        %v688 = vld [vmem:[#allocation2 + $0x9] sm:$0xff]
        %v689 = vld [vmem:[#allocation2 + $0x19] sm:$0xff]
        %v690 = vld [vmem:[#allocation2 + $0x21] sm:$0xff]
        %v691 = vld [vmem:[#allocation2 + $0x2] sm:$0xff]
        %v692 = vld [vmem:[#allocation2 + $0xa] sm:$0xff]
        %v693 = vld [vmem:[#allocation2 + $0x1a] sm:$0xff]
        %v694 = vld [vmem:[#allocation2 + $0x22] sm:$0xff]
        %v695 = vld [vmem:[%s345] sm:$0xff]
        %v696 = vld [vmem:[%s345 + $0x8] sm:$0xff]
        %v697 = vld [vmem:[%s345 + $0x10] sm:$0xff]
        %v698 = vld [vmem:[%s345 + $0x18] sm:$0xff]
        %v699 = vld [vmem:[%s345 + $0x20] sm:$0xff]
        %v700 = vld [vmem:[%s345 + $0x28] sm:$0xff]
        %v701 = vld [vmem:[%s345 + $0x30] sm:$0xff]
        %v702 = vld [vmem:[%s345 + $0x38] sm:$0xff]
        %v703 = vld [vmem:[%s345 + $0x40] sm:$0xff]
        %v704 = vld [vmem:[%s345 + $0x48] sm:$0xff]
        %v705 = vld [vmem:[%s345 + $0x50] sm:$0xff]
        %v706 = vld [vmem:[%s345 + $0x58] sm:$0xff]
        %v707 = vld [vmem:[%s345 + $0x60] sm:$0xff]
        %v708 = vld [vmem:[%s345 + $0x68] sm:$0xff]
        %v709 = vld [vmem:[%s345 + $0x70] sm:$0xff]
        %v710 = vld [vmem:[%s345 + $0x78] sm:$0xff]
        %v711 = vld [vmem:[%s345 + $0x80] sm:$0xff]
        %v712 = vld [vmem:[%s345 + $0x88] sm:$0xff]
        %v713 = vld [vmem:[%s345 + $0x90] sm:$0xff]
        %v714 = vld [vmem:[%s345 + $0x98] sm:$0xff]
        %v715 = vld [vmem:[%s345 + $0xa0] sm:$0xff]
        %v716 = vld [vmem:[%s345 + $0xa8] sm:$0xff]
        %v717 = vld [vmem:[%s345 + $0xb0] sm:$0xff]
        %v718 = vld [vmem:[%s345 + $0xb8] sm:$0xff]
        %v719 = vld [vmem:[%s345 + $0xc0] sm:$0xff]
        %v720 = vld [vmem:[%s345 + $0xc8] sm:$0xff]
        %v721 = vld [vmem:[%s345 + $0xd0] sm:$0xff]
        %v722 = vld [vmem:[%s345 + $0xd8] sm:$0xff]
        %v723 = vld [vmem:[%s345 + $0xe0] sm:$0xff]
        %v724 = vld [vmem:[%s345 + $0xe8] sm:$0xff]
        %v725 = vld [vmem:[%s345 + $0xf0] sm:$0xff]
        %v726 = vld [vmem:[%s345 + $0xf8] sm:$0xff]
        %v727 = vld [vmem:[%s345 + $0x100] sm:$0xff]
        %v728 = vld [vmem:[%s345 + $0x108] sm:$0xff]
        %v729 = vld [vmem:[%s345 + $0x110] sm:$0xff]
        %v730 = vld [vmem:[%s345 + $0x118] sm:$0xff]
        %v731 = vld [vmem:[%s345 + $0x120] sm:$0xff]
        %v732 = vld [vmem:[%s345 + $0x128] sm:$0xff]
        %v733 = vld [vmem:[%s345 + $0x130] sm:$0xff]
        %v734 = vld [vmem:[%s345 + $0x138] sm:$0xff]
        %v735 = vld [vmem:[%s345 + $0x140] sm:$0xff]
        %v736 = vld [vmem:[%s345 + $0x148] sm:$0xff]
        %v737 = vld [vmem:[%s345 + $0x150] sm:$0xff]
        %v738 = vld [vmem:[%s345 + $0x158] sm:$0xff]
        %v739 = vld [vmem:[%s345 + $0x160] sm:$0xff]
        %v740 = vld [vmem:[%s345 + $0x168] sm:$0xff]
        %v741 = vld [vmem:[%s345 + $0x170] sm:$0xff]
        %v742 = vld [vmem:[%s345 + $0x178] sm:$0xff]
        %v744 = vlaneseq
        %v745 = vshrl.u32 %v744, 7
        %v746 = vsub.s32 0, %v745
        %v747 = vrot.slane %v678, %v746
        %749 = vmatprep.subr.mxu0 0.0
        %750 = vmatpush1.msra.mxu0 %v695
        %751 = vmatprep.subr.mxu0 0.0
        %752 = vmatpush1.msra.mxu0 %v696
        %753 = vmatprep.subr.mxu0 0.0
        %754 = vmatpush1.msra.mxu0 %v697
        %755 = vmatprep.subr.mxu0 0.0
        %756 = vmatpush1.msra.mxu0 %v698
        %757 = vmatprep.subr.mxu0 0.0
        %758 = vmatpush1.msra.mxu0 %v699
        %759 = vmatprep.subr.mxu0 0.0
        %760 = vmatpush1.msra.mxu0 %v700
        %761 = vmatprep.subr.mxu0 0.0
        %762 = vmatpush1.msra.mxu0 %v701
        %763 = vmatprep.subr.mxu0 0.0
        %764 = vmatpush1.msra.mxu0 %v702
        %765 = vmatprep.subr.mxu0 0.0
        %766 = vmatpush1.msra.mxu0 %v703
        %767 = vmatprep.subr.mxu0 0.0
        %768 = vmatpush1.msra.mxu0 %v704
        %769 = vmatprep.subr.mxu0 0.0
        %770 = vmatpush1.msra.mxu0 %v705
        %771 = vmatprep.subr.mxu0 0.0
        %772 = vmatpush1.msra.mxu0 %v706
        %773 = vmatprep.subr.mxu0 0.0
        %774 = vmatpush1.msra.mxu0 %v707
        %775 = vmatprep.subr.mxu0 0.0
        %776 = vmatpush1.msra.mxu0 %v708
        %777 = vmatprep.subr.mxu0 0.0
        %778 = vmatpush1.msra.mxu0 %v709
        %779 = vmatprep.subr.mxu0 0.0
        %780 = vmatpush1.msra.mxu0 %v710
        %781 = vmatprep.subr.mxu0 0.0
        %782 = vmatpush1.msra.mxu0 %v711
        %783 = vmatprep.subr.mxu0 0.0
        %784 = vmatpush1.msra.mxu0 %v712
        %785 = vmatprep.subr.mxu0 0.0
        %786 = vmatpush1.msra.mxu0 %v713
        %787 = vmatprep.subr.mxu0 0.0
        %788 = vmatpush1.msra.mxu0 %v714
        %789 = vmatprep.subr.mxu0 0.0
        %790 = vmatpush1.msra.mxu0 %v715
        %791 = vmatprep.subr.mxu0 0.0
        %792 = vmatpush1.msra.mxu0 %v716
        %793 = vmatprep.subr.mxu0 0.0
        %794 = vmatpush1.msra.mxu0 %v717
        %795 = vmatprep.subr.mxu0 0.0
        %796 = vmatpush1.msra.mxu0 %v718
        %797 = vmatprep.subr.mxu0 0.0
        %798 = vmatpush1.msra.mxu0 %v719
        %799 = vmatprep.subr.mxu0 0.0
        %800 = vmatpush1.msra.mxu0 %v720
        %801 = vmatprep.subr.mxu0 0.0
        %802 = vmatpush1.msra.mxu0 %v721
        %803 = vmatprep.subr.mxu0 0.0
        %804 = vmatpush1.msra.mxu0 %v722
        %805 = vmatprep.subr.mxu0 0.0
        %806 = vmatpush1.msra.mxu0 %v723
        %807 = vmatprep.subr.mxu0 0.0
        %808 = vmatpush1.msra.mxu0 %v724
        %809 = vmatprep.subr.mxu0 0.0
        %810 = vmatpush1.msra.mxu0 %v725
        %811 = vmatprep.subr.mxu0 0.0
        %812 = vmatpush1.msra.mxu0 %v726
        %813 = vmatprep.mubr.f32.mxu0 %v687
        %814 = vmatmul.mubr.f32.gmra.mrb[0].mxu0 %v683
        %v815 = vpop.f32.mrb[0].mxu0
        %v816 = vadd.f32 %v747, %v815
        %v817 = vpop.f32.mrb[0].mxu0
        %818 = vmatprep.mubr.f32.mxu0 %v688
        %819 = vmatmul.mubr.f32.gmra.mrb[0].mxu0 %v684
        %v820 = vpop.f32.mrb[0].mxu0
        %v821 = vadd.f32 %v747, %v820
        %v822 = vpop.f32.mrb[0].mxu0
        %823 = vmatprep.mubr.f32.mxu0 %v689
        %824 = vmatmul.mubr.f32.gmra.mrb[0].mxu0 %v685
        %v825 = vpop.f32.mrb[0].mxu0
        %v826 = vadd.f32 %v747, %v825
        %v827 = vpop.f32.mrb[0].mxu0
        %828 = vmatprep.mubr.f32.mxu0 %v690
        %829 = vmatmul.mubr.f32.gmra.mrb[0].mxu0 %v686
        %v830 = vpop.f32.mrb[0].mxu0
        %v831 = vadd.f32 %v747, %v830
        %v832 = vpop.f32.mrb[0].mxu0
        %833 = vdwg.mxu0
        %834 = vmatprep.subr.mxu0 0.0
        %835 = vmatpush1.msra.mxu0 %v727
        %836 = vmatprep.subr.mxu0 0.0
        %837 = vmatpush1.msra.mxu0 %v728
        %838 = vmatprep.subr.mxu0 0.0
        %839 = vmatpush1.msra.mxu0 %v729
        %840 = vmatprep.subr.mxu0 0.0
        %841 = vmatpush1.msra.mxu0 %v730
        %842 = vmatprep.subr.mxu0 0.0
        %843 = vmatpush1.msra.mxu0 %v731
        %844 = vmatprep.subr.mxu0 0.0
        %845 = vmatpush1.msra.mxu0 %v732
        %846 = vmatprep.subr.mxu0 0.0
        %847 = vmatpush1.msra.mxu0 %v733
        %848 = vmatprep.subr.mxu0 0.0
        %849 = vmatpush1.msra.mxu0 %v734
        %850 = vmatprep.subr.mxu0 0.0
        %851 = vmatpush1.msra.mxu0 %v735
        %852 = vmatprep.subr.mxu0 0.0
        %853 = vmatpush1.msra.mxu0 %v736
        %854 = vmatprep.subr.mxu0 0.0
        %855 = vmatpush1.msra.mxu0 %v737
        %856 = vmatprep.subr.mxu0 0.0
        %857 = vmatpush1.msra.mxu0 %v738
        %858 = vmatprep.subr.mxu0 0.0
        %859 = vmatpush1.msra.mxu0 %v739
        %860 = vmatprep.subr.mxu0 0.0
        %861 = vmatpush1.msra.mxu0 %v740
        %862 = vmatprep.subr.mxu0 0.0
        %863 = vmatpush1.msra.mxu0 %v741
        %864 = vmatprep.subr.mxu0 0.0
        %865 = vmatpush1.msra.mxu0 %v742
        %866 = vmatprep.subr.mxu0 0.0
        %867 = vmatpush1.msra.mxu0 0.0
        %868 = vmatprep.subr.mxu0 0.0
        %869 = vmatpush1.msra.mxu0 0.0
        %870 = vmatprep.subr.mxu0 0.0
        %871 = vmatpush1.msra.mxu0 0.0
        %872 = vmatprep.subr.mxu0 0.0
        %873 = vmatpush1.msra.mxu0 0.0
        %874 = vmatprep.subr.mxu0 0.0
        %875 = vmatpush1.msra.mxu0 0.0
        %876 = vmatprep.subr.mxu0 0.0
        %877 = vmatpush1.msra.mxu0 0.0
        %878 = vmatprep.subr.mxu0 0.0
        %879 = vmatpush1.msra.mxu0 0.0
        %880 = vmatprep.subr.mxu0 0.0
        %881 = vmatpush1.msra.mxu0 0.0
        %882 = vmatprep.subr.mxu0 0.0
        %883 = vmatpush1.msra.mxu0 0.0
        %884 = vmatprep.subr.mxu0 0.0
        %885 = vmatpush1.msra.mxu0 0.0
        %886 = vmatprep.subr.mxu0 0.0
        %887 = vmatpush1.msra.mxu0 0.0
        %888 = vmatprep.subr.mxu0 0.0
        %889 = vmatpush1.msra.mxu0 0.0
        %890 = vmatprep.subr.mxu0 0.0
        %891 = vmatpush1.msra.mxu0 0.0
        %892 = vmatprep.subr.mxu0 0.0
        %893 = vmatpush1.msra.mxu0 0.0
        %894 = vmatprep.subr.mxu0 0.0
        %895 = vmatpush1.msra.mxu0 0.0
        %896 = vmatprep.subr.mxu0 0.0
        %897 = vmatpush1.msra.mxu0 0.0
        %898 = vmatprep.mubr.f32.mxu0 0.0
        %899 = vmatmul.mubr.f32.gmra.mrb[0].mxu0 %v691
        %v900 = vpop.f32.mrb[0].mxu0
        %v901 = vadd.f32 %v816, %v900
        %v902 = vpop.f32.mrb[0].mxu0
        %903 = vmatprep.mubr.f32.mxu0 0.0
        %904 = vmatmul.mubr.f32.gmra.mrb[0].mxu0 %v692
        %v905 = vpop.f32.mrb[0].mxu0
        %v906 = vadd.f32 %v821, %v905
        %v907 = vpop.f32.mrb[0].mxu0
        %908 = vmatprep.mubr.f32.mxu0 0.0
        %909 = vmatmul.mubr.f32.gmra.mrb[0].mxu0 %v693
        %v910 = vpop.f32.mrb[0].mxu0
        %v911 = vadd.f32 %v826, %v910
        %v912 = vpop.f32.mrb[0].mxu0
        %913 = vmatprep.mubr.f32.mxu0 0.0
        %914 = vmatmul.mubr.f32.gmra.mrb[0].mxu0 %v694
        %v915 = vpop.f32.mrb[0].mxu0
        %v916 = vadd.f32 %v831, %v915
        %v917 = vpop.f32.mrb[0].mxu0
        %918 = vdwg.mxu0
        %v919 = vadd.f32 %v901, %v419
        %v920 = vadd.f32 %v906, %v420
        %v921 = vadd.f32 %v911, %v421
        %v922 = vadd.f32 %v916, %v422
        %v923 = vmax.f32 %v919, 0.0
        %v924 = vmax.f32 %v920, 0.0
        %v925 = vmax.f32 %v921, 0.0
        %v926 = vmax.f32 %v922, 0.0
        %v927 = vadd.f32 %v923, %v924
        %v928 = vrot.slane %v927, 4
        %v929 = vadd.f32 %v927, %v928
        %v930 = vrot.slane %v929, 2
        %v931 = vadd.f32 %v929, %v930
        %v932 = vrot.slane %v931, 1
        %v933 = vadd.f32 %v931, %v932
        %v934 = vadd.f32 %v925, %v926
        %v935 = vrot.slane %v934, 4
        %v936 = vadd.f32 %v934, %v935
        %v937 = vrot.slane %v936, 2
        %v938 = vadd.f32 %v936, %v937
        %v939 = vrot.slane %v938, 1
        %v940 = vadd.f32 %v938, %v939
        %v941 = vld [vmem:[%s415] sm:$0xff]
        %v942 = vld [vmem:[%s415 + $0x8] sm:$0xff]
        %v943 = vld [vmem:[%s415 + $0x10] sm:$0xff]
        %v944 = vld [vmem:[%s415 + $0x18] sm:$0xff]
        %v945 = vld [vmem:[%s415 + $0x20] sm:$0xff]
        %v946 = vld [vmem:[%s415 + $0x28] sm:$0xff]
        %v947 = vld [vmem:[%s415 + $0x30] sm:$0xff]
        %v948 = vld [vmem:[%s415 + $0x38] sm:$0xff]
        %v949 = vld [vmem:[%s415 + $0x40] sm:$0xff]
        %v950 = vld [vmem:[%s415 + $0x48] sm:$0xff]
        %v951 = vld [vmem:[%s415 + $0x50] sm:$0xff]
        %v952 = vld [vmem:[%s415 + $0x58] sm:$0xff]
        %v953 = vld [vmem:[%s415 + $0x60] sm:$0xff]
        %v954 = vld [vmem:[%s415 + $0x68] sm:$0xff]
        %v955 = vld [vmem:[%s415 + $0x70] sm:$0xff]
        %v956 = vld [vmem:[%s415 + $0x78] sm:$0xff]
        %v957 = vld [vmem:[%s418] sm:$0x1]
        %v959 = vlaneseq
        %v960 = vshrl.u32 %v959, 7
        %v961 = vsub.s32 0, %v960
        %v962 = vrot.slane %v957, %v961
        %vm966 = vcmask 1041409
        %v967 = vsel %vm966, %v940, %v933
        %969 = vmatprep.subr.mxu0 0.0
        %970 = vmatpush1.msra.mxu0 %v941
        %971 = vmatprep.subr.mxu0 0.0
        %972 = vmatpush1.msra.mxu0 %v942
        %973 = vmatprep.subr.mxu0 0.0
        %974 = vmatpush1.msra.mxu0 %v943
        %975 = vmatprep.subr.mxu0 0.0
        %976 = vmatpush1.msra.mxu0 %v944
        %977 = vmatprep.subr.mxu0 0.0
        %978 = vmatpush1.msra.mxu0 %v945
        %979 = vmatprep.subr.mxu0 0.0
        %980 = vmatpush1.msra.mxu0 %v946
        %981 = vmatprep.subr.mxu0 0.0
        %982 = vmatpush1.msra.mxu0 %v947
        %983 = vmatprep.subr.mxu0 0.0
        %984 = vmatpush1.msra.mxu0 %v948
        %985 = vmatprep.subr.mxu0 0.0
        %986 = vmatpush1.msra.mxu0 %v949
        %987 = vmatprep.subr.mxu0 0.0
        %988 = vmatpush1.msra.mxu0 %v950
        %989 = vmatprep.subr.mxu0 0.0
        %990 = vmatpush1.msra.mxu0 %v951
        %991 = vmatprep.subr.mxu0 0.0
        %992 = vmatpush1.msra.mxu0 %v952
        %993 = vmatprep.subr.mxu0 0.0
        %994 = vmatpush1.msra.mxu0 %v953
        %995 = vmatprep.subr.mxu0 0.0
        %996 = vmatpush1.msra.mxu0 %v954
        %997 = vmatprep.subr.mxu0 0.0
        %998 = vmatpush1.msra.mxu0 %v955
        %999 = vmatprep.subr.mxu0 0.0
        %1000 = vmatpush1.msra.mxu0 %v956
        %1001 = vmatprep.subr.mxu0 0.0
        %1002 = vmatpush1.msra.mxu0 0.0
        %1003 = vmatprep.subr.mxu0 0.0
        %1004 = vmatpush1.msra.mxu0 0.0
        %1005 = vmatprep.subr.mxu0 0.0
        %1006 = vmatpush1.msra.mxu0 0.0
        %1007 = vmatprep.subr.mxu0 0.0
        %1008 = vmatpush1.msra.mxu0 0.0
        %1009 = vmatprep.subr.mxu0 0.0
        %1010 = vmatpush1.msra.mxu0 0.0
        %1011 = vmatprep.subr.mxu0 0.0
        %1012 = vmatpush1.msra.mxu0 0.0
        %1013 = vmatprep.subr.mxu0 0.0
        %1014 = vmatpush1.msra.mxu0 0.0
        %1015 = vmatprep.subr.mxu0 0.0
        %1016 = vmatpush1.msra.mxu0 0.0
        %1017 = vmatprep.subr.mxu0 0.0
        %1018 = vmatpush1.msra.mxu0 0.0
        %1019 = vmatprep.subr.mxu0 0.0
        %1020 = vmatpush1.msra.mxu0 0.0
        %1021 = vmatprep.subr.mxu0 0.0
        %1022 = vmatpush1.msra.mxu0 0.0
        %1023 = vmatprep.subr.mxu0 0.0
        %1024 = vmatpush1.msra.mxu0 0.0
        %1025 = vmatprep.subr.mxu0 0.0
        %1026 = vmatpush1.msra.mxu0 0.0
        %1027 = vmatprep.subr.mxu0 0.0
        %1028 = vmatpush1.msra.mxu0 0.0
        %1029 = vmatprep.subr.mxu0 0.0
        %1030 = vmatpush1.msra.mxu0 0.0
        %1031 = vmatprep.subr.mxu0 0.0
        %1032 = vmatpush1.msra.mxu0 0.0
        %1033 = vmatprep.mubr.f32.mxu0 0.0
        %1034 = vmatmul.mubr.f32.gmra.mrb[0].mxu0 %v967
        %v1035 = vpop.f32.mrb[0].mxu0
        %v1036 = vadd.f32 %v962, %v1035
        %v1037 = vpop.f32.mrb[0].mxu0
        %1038 = vdwg.mxu0
        %vm1039 = vcmask 58368
        %1040 = vst.msk [vmem:[%s399] sm:$0x3] %vm1039, %v1036
        %s1041 = sand.u32 %s217, 1
        %s1042 = scalar_lea.sflag [#allocation5], %s1041
        %s1043 = sand.u32 %s217, 1
        %s1044 = smul.addr %s1043, 2
        %s1045 = scalar_lea.vmem [#allocation8], %s1044
        // Predicated region
        $region57: #{tpu_custom_call.1} parent=47 // pred_check
          %p1046 = pneg %p227
        $region58: #{tpu_custom_call.1} parent=47 // pred_check_branch
          %1048 = sbr.rel (%p1046) target = $region60
        $region59: #{tpu_custom_call.1} parent=47 // pred_region
          %s1050 = ssub.s32 32, 32
          %1051 = vsyncadd %s1042, %s1050
          %s1052 = smul.addr %s27, 32
          %s1053 = scalar_lea.hbm %s7, %s1052
          %s1055 = sshll.u32 %s1045, 4
          %s1056 = int_to_ptr.vmem [resolvable:$true] %s1055
          %1058 = dma.vmem_to_hbm [thread:$0]  %s1056, 32, %s1053, %s1042
        $region60: #{tpu_custom_call.1} parent=47 // pred_fallthru
          _
      $region48: #{tpu_custom_call.1} parent=5 // pred_fallthru
        _
      %p1059 = scmp.le.s32.totalorder 2, %s22
      // Predicated region
      $region61: #{tpu_custom_call.1} parent=5 // pred_check
        %p1060 = pneg %p1059
      $region62: #{tpu_custom_call.1} parent=5 // pred_check_branch
        %1062 = sbr.rel (%p1060) target = $region64
      $region63: #{tpu_custom_call.1} parent=5 // pred_region
        %s1063 = ssub.s32 %s22, 2
        // Predicated region
        $region65: #{tpu_custom_call.1} parent=63 // pred_check
          %p1064 = pneg %p233
        $region66: #{tpu_custom_call.1} parent=63 // pred_check_branch
          %1066 = sbr.rel (%p1064) target = $region68
        $region67: #{tpu_custom_call.1} parent=63 // pred_region
          %s1067 = sand.u32 %s218, 1
          %s1068 = scalar_lea.sflag [#allocation5], %s1067
          %s1069 = sand.u32 %s218, 1
          %s1070 = smul.addr %s1069, 2
          %s1071 = scalar_lea.vmem [#allocation8], %s1070
          %1072 = dma.done %s1068, 32
        $region68: #{tpu_custom_call.1} parent=63 // pred_fallthru
          _
      $region64: #{tpu_custom_call.1} parent=5 // pred_fallthru
        _
    $region6: #{tpu_custom_call.1} parent=1 // loop_footer
      %s26 = sadd.s32 1, %s22
    $region7: #{tpu_custom_call.1} parent=1 // loop_footer_branch
      %21 = sbr.rel target = $region3
    $region8: #{tpu_custom_call.1} parent=1 // loop_exit
      _
    %1073 = vsyncpa [#allocation4], 1
    %s1074 = scalar_lea.sflag [#allocation4], 1
    %1075 = vsyncpa %s1074, 1
    %1076 = vsyncpa [#allocation7], 1
    %s1077 = scalar_lea.sflag [#allocation7], 1
    %1078 = vsyncpa %s1077, 1
    %1079 = vsyncpa [#allocation5], 1
    %s1080 = scalar_lea.sflag [#allocation5], 1
    %1081 = vsyncpa %s1080, 1

</llo_original>
